<compile_context>
chip_gen: v5e
topology: v5e:2x2
jax: 0.10.0
libtpu: 0.0.40
codegen_flags: <defaults>
</compile_context>

<pallas_src>
import functools
import math
import warnings
from typing import List, Optional

import jax
import jax.numpy as jnp
import numpy as np
from jax.experimental import pallas as pl
from jax.experimental.pallas import tpu as pltpu

# Donation of the ragged/padded path may be unusable; the warning is benign.
warnings.filterwarnings("ignore", message="Some donated buffers were not usable")


# ---------------------------------------------------------------------------
# Generation-aware VMEM / tile budgets.
#   v5e / v6e: 128 MiB physical VMEM per TC;  v7x: 64 MiB per TC.
# ---------------------------------------------------------------------------
def _vmem_limit_bytes() -> int:
    cap = 64 * 1024 * 1024  # conservative default = v7x per-TC VMEM
    try:
        cap = int(pltpu.get_tpu_info().vmem_capacity_bytes)
    except Exception:
        pass
    # ~5/8 of physical VMEM: ~40 MiB on v7x, ~80 MiB on v5e/v6e — leaves
    # headroom for scratch/accumulators once a real subclass adds compute.
    return max((cap * 5) // 8, 16 * 1024 * 1024)


_VMEM_LIMIT_BYTES = _vmem_limit_bytes()
# Per-buffer tile target; in + out, double-buffered => ~4x this resident.
_TARGET_TILE_BYTES = min(8 * 1024 * 1024, _VMEM_LIMIT_BYTES // 5)
# Below this per-step payload the fixed grid-step overhead starts to dominate.
_MIN_TILE_BYTES = 512 * 1024


def _choose_lane_width(total: int) -> Optional[int]:
    """Largest multiple of 128 (<= 2048) that divides the flat element count."""
    for lanes in range(2048, 127, -128):
        if total % lanes == 0:
            return lanes
    return None


def _choose_tile_rows(rows: int, lanes: int, itemsize: int) -> int:
    """Row-tile sized by bytes, megacore-aware, sublane-aligned, divisor-friendly."""
    row_bytes = lanes * itemsize

    # 1) Size by bytes: biggest tile whose double-buffered in+out copies fit.
    tile = min(rows, max(_TARGET_TILE_BYTES // row_bytes, 1))

    # 2) Megacore: v7x has 2 TCs — keep >= 2 (ideally 4) grid steps whenever
    #    every step still moves >= _MIN_TILE_BYTES.
    min_rows = max(_MIN_TILE_BYTES // row_bytes, 32)
    if rows >= 4 * min_rows:
        tile = min(tile, pl.cdiv(rows, 4))
    elif rows >= 2 * min_rows:
        tile = min(tile, pl.cdiv(rows, 2))

    # 3) Sublane-friendly rounding (covers f32 / bf16 / int8 packing).
    if tile >= 32:
        tile -= tile % 32
    elif tile >= 8:
        tile -= tile % 8
    tile = max(tile, 1)

    # 4) Prefer a tile that divides rows evenly so the last grid step is not a
    #    ragged, masked partial block (v5e has only 1 vector-store slot/bundle).
    if tile >= 64 and rows % tile != 0:
        for cand in range(tile, tile // 2, -32):
            if rows % cand == 0:
                tile = cand
                break

    return min(tile, rows)


# ---------------------------------------------------------------------------
# Pallas kernel: lane-dense, aliased, tiled HBM pass-through copy.
# ---------------------------------------------------------------------------
def _passthrough_kernel(x_ref, o_ref):
    # Identity body — the hook a real subclass replaces with actual compute.
    o_ref[...] = x_ref[...]


def _build_copy_call(rows: int, lanes: int, tile_rows: int, dtype):
    nbytes = rows * lanes * jnp.dtype(dtype).itemsize
    return pl.pallas_call(
        _passthrough_kernel,
        out_shape=jax.ShapeDtypeStruct((rows, lanes), dtype),
        grid=(pl.cdiv(rows, tile_rows),),
        in_specs=[pl.BlockSpec((tile_rows, lanes), lambda i: (i, 0))],
        out_specs=pl.BlockSpec((tile_rows, lanes), lambda i: (i, 0)),
        # Identity: let the output reuse the (donated) input HBM buffer.
        input_output_aliases={0: 0},
        compiler_params=pltpu.CompilerParams(
            dimension_semantics=("parallel",),
            vmem_limit_bytes=_VMEM_LIMIT_BYTES,
        ),
        cost_estimate=pl.CostEstimate(
            flops=0, transcendentals=0, bytes_accessed=2 * nbytes),
    )


@functools.partial(jax.jit, donate_argnums=(0,))
def _passthrough_aligned(x: jax.Array) -> jax.Array:
    """Flat size divisible by 128: lane-dense 2D view, output aliases donated x."""
    shape = x.shape
    total = math.prod(shape)
    lanes = _choose_lane_width(total)            # guaranteed non-None here
    rows = total // lanes
    x2d = x.reshape(rows, lanes)
    tile_rows = _choose_tile_rows(rows, lanes, jnp.dtype(x.dtype).itemsize)
    y2d = _build_copy_call(rows, lanes, tile_rows, x.dtype)(x2d)
    return y2d.reshape(shape)


@jax.jit
def _passthrough_padded(x: jax.Array) -> jax.Array:
    """Ragged flat size: pad to a multiple of 128 so every store stays unmasked."""
    shape = x.shape
    total = math.prod(shape)
    lanes = 1024 if total >= 1024 else 128
    padded = pl.cdiv(total, lanes) * lanes
    flat = jnp.pad(x.reshape(total), (0, padded - total))
    rows = padded // lanes
    x2d = flat.reshape(rows, lanes)
    tile_rows = _choose_tile_rows(rows, lanes, jnp.dtype(x.dtype).itemsize)
    y2d = _build_copy_call(rows, lanes, tile_rows, x.dtype)(x2d)
    return y2d.reshape(padded)[:total].reshape(shape)


def _pallas_passthrough(x: jax.Array) -> jax.Array:
    """Identity forward via the Pallas tiled copy (whole tensor path under jit)."""
    total = math.prod(x.shape)
    if total == 0:
        return x
    if total % 128 == 0:
        return _passthrough_aligned(x)
    return _passthrough_padded(x)


# ---------------------------------------------------------------------------
# Module port.
# ---------------------------------------------------------------------------
class BaseModule:
    """JAX/Pallas port of the PyTorch BaseModule (abstract base class)."""

    def __init__(
        self,
        track_inputs: bool = True,
        num_attn_visual_debug: int = 1,
        num_visual_debug: int = 1,
        debug_val_keys: List[str] = ["input_size", "input_length", "acc"],
    ):
        self.debug_info = {} if track_inputs else None
        self.num_attn_visual_debug = num_attn_visual_debug
        self.num_visual_debug = num_visual_debug
        self.debug_val_keys = debug_val_keys

    def get_debug_values(self, step, __):
        all_info = {} if self.debug_info is None else self.debug_info
        return {k: all_info[k] for k in self.debug_val_keys}

    def get_annotation(self, inputs_dict, indice):
        return None

    def forward(self, x: jnp.ndarray) -> jnp.ndarray:
        # Abstract in the original module; here: identity pass-through on TPU
        # via the Pallas copy kernel, recording the debug bookkeeping that
        # subclasses rely on.  NOTE: debug_info mutation is a Python side
        # effect; under jit it only happens at trace time.
        if self.debug_info is not None:
            self.debug_info["input_size"] = tuple(int(d) for d in x.shape)
            self.debug_info["input_length"] = int(math.prod(x.shape))
            self.debug_info["acc"] = 0.0
        # TODO(synk): a literal identity needs no kernel at all (`return x`);
        # the Pallas pass-through is retained as the overridable forward body.
        return _pallas_passthrough(x)

    def __call__(self, x):
        return self.forward(x)


if __name__ == "__main__":
    # ---- pure-Python check of the byte-based tiling policy (no extra compile)
    t = _choose_tile_rows(rows=32768, lanes=512, itemsize=4)   # 64 MiB array
    assert t % 32 == 0
    assert t * 512 * 4 <= _TARGET_TILE_BYTES                   # byte-sized tile
    assert pl.cdiv(32768, t) >= 2                              # >= 2 grid steps (v7x megacore)

    key = jax.random.PRNGKey(0)

    # ---- lane-dense path (flat size multiple of 128); input is donated.
    x = jax.random.normal(key, (2, 4, 16, 16), dtype=jnp.float32)   # NCHW
    x_host = np.asarray(x)                                          # pre-donation copy
    module = BaseModule(track_inputs=True)
    y = jax.block_until_ready(module(x))
    assert y.shape == x_host.shape and y.dtype == x_host.dtype
    assert np.allclose(np.asarray(y), x_host)

    dbg = module.get_debug_values(0, None)
    assert set(dbg.keys()) == {"input_size", "input_length", "acc"}
    assert dbg["input_size"] == (2, 4, 16, 16)
    assert dbg["input_length"] == 2 * 4 * 16 * 16

    # ---- ragged fallback path (flat size NOT a multiple of 128): padded lane-dense.
    x2 = jax.random.normal(jax.random.PRNGKey(1), (2, 3, 5, 7), dtype=jnp.float32)
    x2_host = np.asarray(x2)
    y2 = jax.block_until_ready(module(x2))
    assert y2.shape == x2_host.shape and y2.dtype == x2_host.dtype
    assert np.allclose(np.asarray(y2), x2_host)

    print("KERNEL_OK")
</pallas_src>

<mosaic_0001>
module attributes {stable_mosaic.version = 11 : i64} {
  func.func @_passthrough_kernel(%arg0: i32, %arg1: memref<1x2048xf32, #tpu.memory_space<vmem>>, %arg2: memref<1x2048xf32, #tpu.memory_space<vmem>>) attributes {dimension_semantics = [#tpu.dimension_semantics<parallel>], iteration_bounds = array<i64: 1>, scalar_prefetch = 0 : i64, scratch_operands = 0 : i64, tpu.core_type = #tpu.core_type<tc>, window_params = [{transform_indices = @transform_0, window_bounds = array<i64: 1, 2048>}, {transform_indices = @transform_1, window_bounds = array<i64: 1, 2048>}]} {
    %c0 = arith.constant 0 : index
    %c0_0 = arith.constant 0 : index
    %0 = vector.load %arg1[%c0, %c0_0] : memref<1x2048xf32, #tpu.memory_space<vmem>>, vector<1x2048xf32>
    %c0_1 = arith.constant 0 : index
    %c0_2 = arith.constant 0 : index
    %1 = vector.load %arg2[%c0_1, %c0_2] : memref<1x2048xf32, #tpu.memory_space<vmem>>, vector<1x2048xf32>
    tpu.vector_store %arg2[%c0_1, %c0_2], %0 {strides = array<i32>} : memref<1x2048xf32, #tpu.memory_space<vmem>>, vector<1x2048xf32>,
    return
  }
  func.func @transform_0(%arg0: i32) -> (i32, i32) {
    %c0_i32 = arith.constant 0 : i32
    %c0_i32_0 = arith.constant 0 : i32
    return %arg0, %c0_i32 : i32, i32
  }
  func.func @transform_1(%arg0: i32) -> (i32, i32) {
    %c0_i32 = arith.constant 0 : i32
    %c0_i32_0 = arith.constant 0 : i32
    return %arg0, %c0_i32 : i32, i32
  }
}

</mosaic_0001>

<llo_original>
// kernel: _passthrough_aligned.1
$region0: #{_passthrough_aligned.1}
  #allocation0 [shape = 'u32[]', space=smem, size = 0x4, offset = 0x4, fixed_abs, tag = 'smem constant byte address 0x4 - core index']
  #allocation1 [shape = 'u32[72,128]{1,0:T(1,128)}', space=vmem, size = 0x9000, scoped, tag = 'internal scratch']
  %s0 = inlined_call_operand.vmem [shape: f32[1,2048], index: 0, kind: input, shape index: {}, may-alias: {0,1}]
  %s1 = inlined_call_operand.vmem [shape: f32[1,2048], index: 1, kind: output, shape index: {}, may-alias: {0,1}]
  %s2 = sld [smem:[#allocation0]]
  $region14: #{_passthrough_aligned.1} parent=0
    _
  %s4 = ssub.s32 1, %s2
  %s5 = scalar_select 0, %s4, %s2
  // Predicated region
  $region2: #{_passthrough_aligned.1} parent=0 // pred_check
    _
  $region3: #{_passthrough_aligned.1} parent=0 // pred_check_branch
    %7 = sbr.rel (0) target = $region5
  $region4: #{_passthrough_aligned.1} parent=0 // pred_region
    _
  $region5: #{_passthrough_aligned.1} parent=0 // pred_fallthru
    _
  %v8 = vld [vmem:[%s0] sm:$0xff]
  %v9 = vld [vmem:[%s0 + $0x8] sm:$0xff]
  %10 = vst [vmem:[%s1] sm:$0xff] %v8
  %11 = vst [vmem:[%s1 + $0x8] sm:$0xff] %v9
  // Predicated region
  $region6: #{_passthrough_aligned.1} parent=0 // pred_check
    _
  $region7: #{_passthrough_aligned.1} parent=0 // pred_check_branch
    %13 = sbr.rel (0) target = $region9
  $region8: #{_passthrough_aligned.1} parent=0 // pred_region
    _
  $region9: #{_passthrough_aligned.1} parent=0 // pred_fallthru
    _
  // Predicated region
  $region10: #{_passthrough_aligned.1} parent=0 // pred_check
    _
  $region11: #{_passthrough_aligned.1} parent=0 // pred_check_branch
    %15 = sbr.rel (0) target = $region13
  $region12: #{_passthrough_aligned.1} parent=0 // pred_region
    _
  $region13: #{_passthrough_aligned.1} parent=0 // pred_fallthru
    _

</llo_original>
